<compile_context>
chip_gen: v6e
topology: v6e:2x2x1
jax: 0.10.0
libtpu: 0.0.40
codegen_flags: <defaults>
</compile_context>

<pallas_src>
import jax
import jax.numpy as jnp
from jax import lax
from jax.experimental import pallas as pl
from jax.experimental.pallas import tpu as pltpu


def _rnn_kernel(x_ref, h0_ref, wih_ref, whh_ref, b_ref, out_ref, hn_ref, ph_scr):
    B, S, I = x_ref.shape
    H = hn_ref.shape[-1]

    wih = wih_ref[...]       # (I, H) f32
    whh = whh_ref[...]       # (H, H) f32
    bias = b_ref[...]        # (1, H) f32

    # ---- Phase 1 (hoisted, non-recurrent): one fused (B*S, I) x (I, H) matmul
    # plus a single bias broadcast, written into the f32 scratch.
    x2d = x_ref[...].reshape(B * S, I).astype(jnp.float32)
    proj = jnp.dot(x2d, wih, preferred_element_type=jnp.float32) + bias
    ph_scr[...] = proj.reshape(B, S, H)

    # ---- Phase 2: serial recurrence, fully unrolled (S is tiny); the hidden
    # state is carried in vregs.  h_t is written back in-place into ph_scr so
    # no masked per-step output store / cast sits on the serial critical chain.
    def step(t, h):
        h_new = jnp.tanh(
            ph_scr[:, t, :]
            + jnp.dot(h, whh, preferred_element_type=jnp.float32)
        )
        ph_scr[:, t, :] = h_new
        return h_new

    h_last = lax.fori_loop(
        0, S, step, h0_ref[...].astype(jnp.float32), unroll=True
    )

    # Single coalesced bulk store of all timesteps + one final-hidden store.
    out_ref[...] = ph_scr[...].astype(out_ref.dtype)
    hn_ref[...] = h_last.astype(hn_ref.dtype)


def w_rnn_vanilla_forward(x, hidden, w_ih, w_hh, b_ih, b_hh):
    """x: (B, S, I), hidden: (B, H). Returns (out (B, S, H), h_n (B, H))."""
    B, S, I = x.shape
    H = hidden.shape[-1]
    dtype = x.dtype

    # Tiny one-time weight prep (not activation-sized HBM traffic).
    wih_t = jnp.transpose(w_ih, (1, 0)).astype(jnp.float32)   # (I, H)
    whh_t = jnp.transpose(w_hh, (1, 0)).astype(jnp.float32)   # (H, H)
    bias = (b_ih + b_hh).reshape(1, H).astype(jnp.float32)    # (1, H)

    vmem = pl.BlockSpec(memory_space=pltpu.MemorySpace.VMEM)

    out, h_n = pl.pallas_call(
        _rnn_kernel,
        out_shape=(
            jax.ShapeDtypeStruct((B, S, H), dtype),   # per-step hidden states
            jax.ShapeDtypeStruct((B, H), dtype),      # final hidden state
        ),
        in_specs=[vmem, vmem, vmem, vmem, vmem],
        out_specs=(vmem, vmem),
        scratch_shapes=[pltpu.VMEM((B, S, H), jnp.float32)],  # proj, reused for h_t
    )(x, hidden, wih_t, whh_t, bias)

    return out, h_n


def _reference_forward(x, hidden, w_ih, w_hh, b_ih, b_hh):
    """Pure-JAX reference of torch.nn.RNN (tanh) forward, batch-major in/out."""
    def step(h, x_t):
        h_new = jnp.tanh(x_t @ w_ih.T + b_ih + h @ w_hh.T + b_hh)
        return h_new, h_new

    x_tm = jnp.transpose(x, (1, 0, 2))
    h_n, outs = lax.scan(step, hidden, x_tm)
    return jnp.transpose(outs, (1, 0, 2)), h_n


if __name__ == "__main__":
    # Small shapes consistent with the module: batch=2, seq=8, input_len=16, hidden=32
    B, S, I, H = 2, 8, 16, 32

    key = jax.random.PRNGKey(0)
    kx, kh, k1, k2, k3, k4 = jax.random.split(key, 6)

    x = jax.random.normal(kx, (B, S, I), dtype=jnp.float32)
    hidden = jax.random.normal(kh, (B, H), dtype=jnp.float32)

    # Deterministic parameter init mimicking torch.nn.RNN: U(-1/sqrt(H), 1/sqrt(H))
    bound = 1.0 / jnp.sqrt(jnp.float32(H))
    w_ih = jax.random.uniform(k1, (H, I), jnp.float32, -bound, bound)
    w_hh = jax.random.uniform(k2, (H, H), jnp.float32, -bound, bound)
    b_ih = jax.random.uniform(k3, (H,), jnp.float32, -bound, bound)
    b_hh = jax.random.uniform(k4, (H,), jnp.float32, -bound, bound)

    out, h_n = w_rnn_vanilla_forward(x, hidden, w_ih, w_hh, b_ih, b_hh)
    jax.block_until_ready((out, h_n))

    out_ref, h_n_ref = _reference_forward(x, hidden, w_ih, w_hh, b_ih, b_hh)
    assert out.shape == (B, S, H) and h_n.shape == (B, H)
    assert jnp.allclose(out, out_ref, atol=1e-5, rtol=1e-5)
    assert jnp.allclose(h_n, h_n_ref, atol=1e-5, rtol=1e-5)

    print("KERNEL_OK")
</pallas_src>

<mosaic_0001>
module attributes {stable_mosaic.version = 11 : i64} {
  func.func @_rnn_kernel(%arg0: memref<2x8x16xf32, #tpu.memory_space<vmem>>, %arg1: memref<2x32xf32, #tpu.memory_space<vmem>>, %arg2: memref<16x32xf32, #tpu.memory_space<vmem>>, %arg3: memref<32x32xf32, #tpu.memory_space<vmem>>, %arg4: memref<1x32xf32, #tpu.memory_space<vmem>>, %arg5: memref<2x8x32xf32, #tpu.memory_space<vmem>>, %arg6: memref<2x32xf32, #tpu.memory_space<vmem>>, %arg7: memref<2x8x32xf32, #tpu.memory_space<vmem>>) attributes {dimension_semantics = [], scalar_prefetch = 0 : i64, scratch_operands = 1 : i64, tpu.core_type = #tpu.core_type<tc>} {
    %c0 = arith.constant 0 : index
    %c0_0 = arith.constant 0 : index
    %0 = vector.load %arg2[%c0, %c0_0] : memref<16x32xf32, #tpu.memory_space<vmem>>, vector<16x32xf32>
    %c0_1 = arith.constant 0 : index
    %c0_2 = arith.constant 0 : index
    %1 = vector.load %arg3[%c0_1, %c0_2] : memref<32x32xf32, #tpu.memory_space<vmem>>, vector<32x32xf32>
    %c0_3 = arith.constant 0 : index
    %c0_4 = arith.constant 0 : index
    %2 = vector.load %arg4[%c0_3, %c0_4] : memref<1x32xf32, #tpu.memory_space<vmem>>, vector<1x32xf32>
    %c0_5 = arith.constant 0 : index
    %c0_6 = arith.constant 0 : index
    %c0_7 = arith.constant 0 : index
    %3 = vector.load %arg0[%c0_5, %c0_6, %c0_7] : memref<2x8x16xf32, #tpu.memory_space<vmem>>, vector<2x8x16xf32>
    %4 = vector.shape_cast %3 : vector<2x8x16xf32> to vector<16x16xf32>
    %cst = arith.constant dense<0.000000e+00> : vector<16x32xf32>
    %5 = tpu.matmul %4, %0, %cst {dimension_numbers = #tpu.dot_dimension_numbers<[1], [0], [0], [1], [0, 0, 1, 1], [], []>} : vector<16x16xf32>, vector<16x32xf32>, vector<16x32xf32> -> vector<16x32xf32>
    %6 = vector.broadcast %2 : vector<1x32xf32> to vector<16x32xf32>
    %7 = arith.addf %5, %6 : vector<16x32xf32>
    %8 = vector.shape_cast %7 : vector<16x32xf32> to vector<2x8x32xf32>
    %c0_8 = arith.constant 0 : index
    %c0_9 = arith.constant 0 : index
    %c0_10 = arith.constant 0 : index
    %9 = vector.load %arg7[%c0_8, %c0_9, %c0_10] : memref<2x8x32xf32, #tpu.memory_space<vmem>>, vector<2x8x32xf32>
    tpu.vector_store %arg7[%c0_8, %c0_9, %c0_10], %8 {strides = array<i32>} : memref<2x8x32xf32, #tpu.memory_space<vmem>>, vector<2x8x32xf32>,
    %c0_11 = arith.constant 0 : index
    %c0_12 = arith.constant 0 : index
    %10 = vector.load %arg1[%c0_11, %c0_12] : memref<2x32xf32, #tpu.memory_space<vmem>>, vector<2x32xf32>
    %c0_i32 = arith.constant 0 : i32
    %c0_13 = arith.constant 0 : index
    %11 = arith.index_cast %c0_i32 : i32 to index
    %c0_14 = arith.constant 0 : index
    %12 = vector.load %arg7[%c0_13, %11, %c0_14] : memref<2x8x32xf32, #tpu.memory_space<vmem>>, vector<2x1x32xf32>
    %13 = vector.shape_cast %12 : vector<2x1x32xf32> to vector<2x32xf32>
    %cst_15 = arith.constant dense<0.000000e+00> : vector<2x32xf32>
    %14 = tpu.matmul %10, %1, %cst_15 {dimension_numbers = #tpu.dot_dimension_numbers<[1], [0], [0], [1], [0, 0, 1, 1], [], []>} : vector<2x32xf32>, vector<32x32xf32>, vector<2x32xf32> -> vector<2x32xf32>
    %15 = arith.addf %13, %14 : vector<2x32xf32>
    %16 = math.tanh %15 : vector<2x32xf32>
    %c0_16 = arith.constant 0 : index
    %17 = arith.index_cast %c0_i32 : i32 to index
    %c0_17 = arith.constant 0 : index
    %18 = vector.load %arg7[%c0_16, %17, %c0_17] : memref<2x8x32xf32, #tpu.memory_space<vmem>>, vector<2x1x32xf32>
    %19 = vector.shape_cast %18 : vector<2x1x32xf32> to vector<2x32xf32>
    %20 = vector.shape_cast %16 : vector<2x32xf32> to vector<2x1x32xf32>
    tpu.vector_store %arg7[%c0_16, %17, %c0_17], %20 {strides = array<i32>} : memref<2x8x32xf32, #tpu.memory_space<vmem>>, vector<2x1x32xf32>,
    %c1_i32 = arith.constant 1 : i32
    %c0_18 = arith.constant 0 : index
    %21 = arith.index_cast %c1_i32 : i32 to index
    %c0_19 = arith.constant 0 : index
    %22 = vector.load %arg7[%c0_18, %21, %c0_19] : memref<2x8x32xf32, #tpu.memory_space<vmem>>, vector<2x1x32xf32>
    %23 = vector.shape_cast %22 : vector<2x1x32xf32> to vector<2x32xf32>
    %cst_20 = arith.constant dense<0.000000e+00> : vector<2x32xf32>
    %24 = tpu.matmul %16, %1, %cst_20 {dimension_numbers = #tpu.dot_dimension_numbers<[1], [0], [0], [1], [0, 0, 1, 1], [], []>} : vector<2x32xf32>, vector<32x32xf32>, vector<2x32xf32> -> vector<2x32xf32>
    %25 = arith.addf %23, %24 : vector<2x32xf32>
    %26 = math.tanh %25 : vector<2x32xf32>
    %c0_21 = arith.constant 0 : index
    %27 = arith.index_cast %c1_i32 : i32 to index
    %c0_22 = arith.constant 0 : index
    %28 = vector.load %arg7[%c0_21, %27, %c0_22] : memref<2x8x32xf32, #tpu.memory_space<vmem>>, vector<2x1x32xf32>
    %29 = vector.shape_cast %28 : vector<2x1x32xf32> to vector<2x32xf32>
    %30 = vector.shape_cast %26 : vector<2x32xf32> to vector<2x1x32xf32>
    tpu.vector_store %arg7[%c0_21, %27, %c0_22], %30 {strides = array<i32>} : memref<2x8x32xf32, #tpu.memory_space<vmem>>, vector<2x1x32xf32>,
    %c2_i32 = arith.constant 2 : i32
    %c0_23 = arith.constant 0 : index
    %31 = arith.index_cast %c2_i32 : i32 to index
    %c0_24 = arith.constant 0 : index
    %32 = vector.load %arg7[%c0_23, %31, %c0_24] : memref<2x8x32xf32, #tpu.memory_space<vmem>>, vector<2x1x32xf32>
    %33 = vector.shape_cast %32 : vector<2x1x32xf32> to vector<2x32xf32>
    %cst_25 = arith.constant dense<0.000000e+00> : vector<2x32xf32>
    %34 = tpu.matmul %26, %1, %cst_25 {dimension_numbers = #tpu.dot_dimension_numbers<[1], [0], [0], [1], [0, 0, 1, 1], [], []>} : vector<2x32xf32>, vector<32x32xf32>, vector<2x32xf32> -> vector<2x32xf32>
    %35 = arith.addf %33, %34 : vector<2x32xf32>
    %36 = math.tanh %35 : vector<2x32xf32>
    %c0_26 = arith.constant 0 : index
    %37 = arith.index_cast %c2_i32 : i32 to index
    %c0_27 = arith.constant 0 : index
    %38 = vector.load %arg7[%c0_26, %37, %c0_27] : memref<2x8x32xf32, #tpu.memory_space<vmem>>, vector<2x1x32xf32>
    %39 = vector.shape_cast %38 : vector<2x1x32xf32> to vector<2x32xf32>
    %40 = vector.shape_cast %36 : vector<2x32xf32> to vector<2x1x32xf32>
    tpu.vector_store %arg7[%c0_26, %37, %c0_27], %40 {strides = array<i32>} : memref<2x8x32xf32, #tpu.memory_space<vmem>>, vector<2x1x32xf32>,
    %c3_i32 = arith.constant 3 : i32
    %c0_28 = arith.constant 0 : index
    %41 = arith.index_cast %c3_i32 : i32 to index
    %c0_29 = arith.constant 0 : index
    %42 = vector.load %arg7[%c0_28, %41, %c0_29] : memref<2x8x32xf32, #tpu.memory_space<vmem>>, vector<2x1x32xf32>
    %43 = vector.shape_cast %42 : vector<2x1x32xf32> to vector<2x32xf32>
    %cst_30 = arith.constant dense<0.000000e+00> : vector<2x32xf32>
    %44 = tpu.matmul %36, %1, %cst_30 {dimension_numbers = #tpu.dot_dimension_numbers<[1], [0], [0], [1], [0, 0, 1, 1], [], []>} : vector<2x32xf32>, vector<32x32xf32>, vector<2x32xf32> -> vector<2x32xf32>
    %45 = arith.addf %43, %44 : vector<2x32xf32>
    %46 = math.tanh %45 : vector<2x32xf32>
    %c0_31 = arith.constant 0 : index
    %47 = arith.index_cast %c3_i32 : i32 to index
    %c0_32 = arith.constant 0 : index
    %48 = vector.load %arg7[%c0_31, %47, %c0_32] : memref<2x8x32xf32, #tpu.memory_space<vmem>>, vector<2x1x32xf32>
    %49 = vector.shape_cast %48 : vector<2x1x32xf32> to vector<2x32xf32>
    %50 = vector.shape_cast %46 : vector<2x32xf32> to vector<2x1x32xf32>
    tpu.vector_store %arg7[%c0_31, %47, %c0_32], %50 {strides = array<i32>} : memref<2x8x32xf32, #tpu.memory_space<vmem>>, vector<2x1x32xf32>,
    %c4_i32 = arith.constant 4 : i32
    %c0_33 = arith.constant 0 : index
    %51 = arith.index_cast %c4_i32 : i32 to index
    %c0_34 = arith.constant 0 : index
    %52 = vector.load %arg7[%c0_33, %51, %c0_34] : memref<2x8x32xf32, #tpu.memory_space<vmem>>, vector<2x1x32xf32>
    %53 = vector.shape_cast %52 : vector<2x1x32xf32> to vector<2x32xf32>
    %cst_35 = arith.constant dense<0.000000e+00> : vector<2x32xf32>
    %54 = tpu.matmul %46, %1, %cst_35 {dimension_numbers = #tpu.dot_dimension_numbers<[1], [0], [0], [1], [0, 0, 1, 1], [], []>} : vector<2x32xf32>, vector<32x32xf32>, vector<2x32xf32> -> vector<2x32xf32>
    %55 = arith.addf %53, %54 : vector<2x32xf32>
    %56 = math.tanh %55 : vector<2x32xf32>
    %c0_36 = arith.constant 0 : index
    %57 = arith.index_cast %c4_i32 : i32 to index
    %c0_37 = arith.constant 0 : index
    %58 = vector.load %arg7[%c0_36, %57, %c0_37] : memref<2x8x32xf32, #tpu.memory_space<vmem>>, vector<2x1x32xf32>
    %59 = vector.shape_cast %58 : vector<2x1x32xf32> to vector<2x32xf32>
    %60 = vector.shape_cast %56 : vector<2x32xf32> to vector<2x1x32xf32>
    tpu.vector_store %arg7[%c0_36, %57, %c0_37], %60 {strides = array<i32>} : memref<2x8x32xf32, #tpu.memory_space<vmem>>, vector<2x1x32xf32>,
    %c5_i32 = arith.constant 5 : i32
    %c0_38 = arith.constant 0 : index
    %61 = arith.index_cast %c5_i32 : i32 to index
    %c0_39 = arith.constant 0 : index
    %62 = vector.load %arg7[%c0_38, %61, %c0_39] : memref<2x8x32xf32, #tpu.memory_space<vmem>>, vector<2x1x32xf32>
    %63 = vector.shape_cast %62 : vector<2x1x32xf32> to vector<2x32xf32>
    %cst_40 = arith.constant dense<0.000000e+00> : vector<2x32xf32>
    %64 = tpu.matmul %56, %1, %cst_40 {dimension_numbers = #tpu.dot_dimension_numbers<[1], [0], [0], [1], [0, 0, 1, 1], [], []>} : vector<2x32xf32>, vector<32x32xf32>, vector<2x32xf32> -> vector<2x32xf32>
    %65 = arith.addf %63, %64 : vector<2x32xf32>
    %66 = math.tanh %65 : vector<2x32xf32>
    %c0_41 = arith.constant 0 : index
    %67 = arith.index_cast %c5_i32 : i32 to index
    %c0_42 = arith.constant 0 : index
    %68 = vector.load %arg7[%c0_41, %67, %c0_42] : memref<2x8x32xf32, #tpu.memory_space<vmem>>, vector<2x1x32xf32>
    %69 = vector.shape_cast %68 : vector<2x1x32xf32> to vector<2x32xf32>
    %70 = vector.shape_cast %66 : vector<2x32xf32> to vector<2x1x32xf32>
    tpu.vector_store %arg7[%c0_41, %67, %c0_42], %70 {strides = array<i32>} : memref<2x8x32xf32, #tpu.memory_space<vmem>>, vector<2x1x32xf32>,
    %c6_i32 = arith.constant 6 : i32
    %c0_43 = arith.constant 0 : index
    %71 = arith.index_cast %c6_i32 : i32 to index
    %c0_44 = arith.constant 0 : index
    %72 = vector.load %arg7[%c0_43, %71, %c0_44] : memref<2x8x32xf32, #tpu.memory_space<vmem>>, vector<2x1x32xf32>
    %73 = vector.shape_cast %72 : vector<2x1x32xf32> to vector<2x32xf32>
    %cst_45 = arith.constant dense<0.000000e+00> : vector<2x32xf32>
    %74 = tpu.matmul %66, %1, %cst_45 {dimension_numbers = #tpu.dot_dimension_numbers<[1], [0], [0], [1], [0, 0, 1, 1], [], []>} : vector<2x32xf32>, vector<32x32xf32>, vector<2x32xf32> -> vector<2x32xf32>
    %75 = arith.addf %73, %74 : vector<2x32xf32>
    %76 = math.tanh %75 : vector<2x32xf32>
    %c0_46 = arith.constant 0 : index
    %77 = arith.index_cast %c6_i32 : i32 to index
    %c0_47 = arith.constant 0 : index
    %78 = vector.load %arg7[%c0_46, %77, %c0_47] : memref<2x8x32xf32, #tpu.memory_space<vmem>>, vector<2x1x32xf32>
    %79 = vector.shape_cast %78 : vector<2x1x32xf32> to vector<2x32xf32>
    %80 = vector.shape_cast %76 : vector<2x32xf32> to vector<2x1x32xf32>
    tpu.vector_store %arg7[%c0_46, %77, %c0_47], %80 {strides = array<i32>} : memref<2x8x32xf32, #tpu.memory_space<vmem>>, vector<2x1x32xf32>,
    %c7_i32 = arith.constant 7 : i32
    %c0_48 = arith.constant 0 : index
    %81 = arith.index_cast %c7_i32 : i32 to index
    %c0_49 = arith.constant 0 : index
    %82 = vector.load %arg7[%c0_48, %81, %c0_49] : memref<2x8x32xf32, #tpu.memory_space<vmem>>, vector<2x1x32xf32>
    %83 = vector.shape_cast %82 : vector<2x1x32xf32> to vector<2x32xf32>
    %cst_50 = arith.constant dense<0.000000e+00> : vector<2x32xf32>
    %84 = tpu.matmul %76, %1, %cst_50 {dimension_numbers = #tpu.dot_dimension_numbers<[1], [0], [0], [1], [0, 0, 1, 1], [], []>} : vector<2x32xf32>, vector<32x32xf32>, vector<2x32xf32> -> vector<2x32xf32>
    %85 = arith.addf %83, %84 : vector<2x32xf32>
    %86 = math.tanh %85 : vector<2x32xf32>
    %c0_51 = arith.constant 0 : index
    %87 = arith.index_cast %c7_i32 : i32 to index
    %c0_52 = arith.constant 0 : index
    %88 = vector.load %arg7[%c0_51, %87, %c0_52] : memref<2x8x32xf32, #tpu.memory_space<vmem>>, vector<2x1x32xf32>
    %89 = vector.shape_cast %88 : vector<2x1x32xf32> to vector<2x32xf32>
    %90 = vector.shape_cast %86 : vector<2x32xf32> to vector<2x1x32xf32>
    tpu.vector_store %arg7[%c0_51, %87, %c0_52], %90 {strides = array<i32>} : memref<2x8x32xf32, #tpu.memory_space<vmem>>, vector<2x1x32xf32>,
    %c8_i32 = arith.constant 8 : i32
    %c0_53 = arith.constant 0 : index
    %c0_54 = arith.constant 0 : index
    %c0_55 = arith.constant 0 : index
    %91 = vector.load %arg7[%c0_53, %c0_54, %c0_55] : memref<2x8x32xf32, #tpu.memory_space<vmem>>, vector<2x8x32xf32>
    %c0_56 = arith.constant 0 : index
    %c0_57 = arith.constant 0 : index
    %c0_58 = arith.constant 0 : index
    %92 = vector.load %arg5[%c0_56, %c0_57, %c0_58] : memref<2x8x32xf32, #tpu.memory_space<vmem>>, vector<2x8x32xf32>
    tpu.vector_store %arg5[%c0_56, %c0_57, %c0_58], %91 {strides = array<i32>} : memref<2x8x32xf32, #tpu.memory_space<vmem>>, vector<2x8x32xf32>,
    %c0_59 = arith.constant 0 : index
    %c0_60 = arith.constant 0 : index
    %93 = vector.load %arg6[%c0_59, %c0_60] : memref<2x32xf32, #tpu.memory_space<vmem>>, vector<2x32xf32>
    tpu.vector_store %arg6[%c0_59, %c0_60], %86 {strides = array<i32>} : memref<2x32xf32, #tpu.memory_space<vmem>>, vector<2x32xf32>,
    return
  }
}

</mosaic_0001>

<llo_original>
// kernel: tpu_custom_call.1
$region0: #{tpu_custom_call.1}
  #allocation0 [shape = 'u32[]', space=smem, size = 0x4, offset = 0x4, fixed_abs, tag = 'smem constant byte address 0x4 - core index']
  #allocation1 [shape = 'u32[144,128]{1,0:T(1,128)}', space=vmem, size = 0x12000, scoped, tag = 'internal scratch']
  #allocation2 [shape = 'f32[2,8,32]{2,1,0:T(8,128)}', space=vmem, size = 0x2000, scoped, tag = 'scratch operand']
  %s0 = inlined_call_operand.hbm [shape: f32[2,8,16], index: 0, kind: input, shape index: {}]
  %s1 = inlined_call_operand.hbm [shape: f32[2,32], index: 1, kind: input, shape index: {}]
  %s2 = inlined_call_operand.hbm [shape: f32[16,32], index: 2, kind: input, shape index: {}]
  %s3 = inlined_call_operand.hbm [shape: f32[32,32], index: 3, kind: input, shape index: {}]
  %s4 = inlined_call_operand.vmem [shape: f32[1,32], index: 4, kind: input, shape index: {}]
  %s5 = inlined_call_operand.hbm [shape: f32[2,8,32], index: 5, kind: output, shape index: {0}]
  %s6 = inlined_call_operand.hbm [shape: f32[2,32], index: 6, kind: output, shape index: {1}]
  %7 = xla_tuple %s5, %s6
  %s8 = sld [smem:[#allocation0]]
  $region54: #{tpu_custom_call.1} parent=0
    _
  %s10 = ssub.s32 1, %s8
  %s11 = scalar_select 0, %s10, %s8
  $region1: #{tpu_custom_call.1} parent=0
    #allocation3 [shape = 'u8[8192]{0}', space=vmem, size = 0x2000, scoped, tag = 'input window, operand 0, single buffered']
    #allocation4 [shape = 's32[1]{0}', space=sflag, size = 0x4, scoped, tag = 'scoped memory for tpu_custom_call.1']
    #allocation5 [shape = 's32[1]{0}', space=sflag, size = 0x4, scoped, tag = 'scoped memory for tpu_custom_call.1']
    #allocation6 [shape = 'u8[1024]{0}', space=vmem, size = 0x400, scoped, tag = 'input window, operand 1, single buffered']
    #allocation7 [shape = 's32[1]{0}', space=sflag, size = 0x4, scoped, tag = 'scoped memory for tpu_custom_call.1']
    #allocation8 [shape = 'u8[8192]{0}', space=vmem, size = 0x2000, scoped, tag = 'input window, operand 2, single buffered']
    #allocation9 [shape = 'u8[16384]{0}', space=vmem, size = 0x4000, scoped, tag = 'input window, operand 3, single buffered']
    #allocation10 [shape = 's32[1]{0}', space=sflag, size = 0x4, scoped, tag = 'scoped memory for tpu_custom_call.1']
    #allocation11 [shape = 'u8[8192]{0}', space=vmem, size = 0x2000, scoped, tag = 'output window, operand 0, single buffered']
    #allocation12 [shape = 'u8[1024]{0}', space=vmem, size = 0x400, scoped, tag = 'output window, operand 1, single buffered']
    #allocation13 [shape = 's32[1]{0}', space=sflag, size = 0x4, scoped, tag = 'scoped memory for tpu_custom_call.1']
    %12 = vsyncpa [#allocation4], 0
    %13 = vsyncpa [#allocation7], 0
    %14 = vsyncpa [#allocation10], 0
    %15 = vsyncpa [#allocation5], 0
    %16 = vsyncpa [#allocation13], 0
    // Predicated region
    $region2: #{tpu_custom_call.1} parent=1 // pred_check
      _
    $region3: #{tpu_custom_call.1} parent=1 // pred_check_branch
      %18 = sbr.rel (0) target = $region5
    $region4: #{tpu_custom_call.1} parent=1 // pred_region
      %s20 = ssub.s32 256, 256
      %21 = vsyncadd [#allocation4], %s20
      %s22 = sshll.u32 [#allocation3], 4
      %s23 = int_to_ptr.vmem [resolvable:$true] %s22
      %28 = dma.hbm_to_vmem [thread:$0]  %s0, 256, %s23, [#allocation4], 128, 128, 8
    $region5: #{tpu_custom_call.1} parent=1 // pred_fallthru
      _
    // Predicated region
    $region6: #{tpu_custom_call.1} parent=1 // pred_check
      _
    $region7: #{tpu_custom_call.1} parent=1 // pred_check_branch
      %30 = sbr.rel (0) target = $region9
    $region8: #{tpu_custom_call.1} parent=1 // pred_region
      %s32 = ssub.s32 32, 32
      %33 = vsyncadd [#allocation7], %s32
      %s35 = sshll.u32 [#allocation6], 4
      %s36 = int_to_ptr.vmem [resolvable:$true] %s35
      %38 = dma.hbm_to_vmem [thread:$0]  %s1, 32, %s36, [#allocation7]
    $region9: #{tpu_custom_call.1} parent=1 // pred_fallthru
      _
    // Predicated region
    $region10: #{tpu_custom_call.1} parent=1 // pred_check
      _
    $region11: #{tpu_custom_call.1} parent=1 // pred_check_branch
      %40 = sbr.rel (0) target = $region13
    $region12: #{tpu_custom_call.1} parent=1 // pred_region
      %s42 = ssub.s32 256, 256
      %43 = vsyncadd [#allocation7], %s42
      %s44 = sshll.u32 [#allocation8], 4
      %s45 = int_to_ptr.vmem [resolvable:$true] %s44
      %50 = dma.hbm_to_vmem [thread:$0]  %s2, 256, %s45, [#allocation7], 128, 128, 8
    $region13: #{tpu_custom_call.1} parent=1 // pred_fallthru
      _
    // Predicated region
    $region14: #{tpu_custom_call.1} parent=1 // pred_check
      _
    $region15: #{tpu_custom_call.1} parent=1 // pred_check_branch
      %52 = sbr.rel (0) target = $region17
    $region16: #{tpu_custom_call.1} parent=1 // pred_region
      %s54 = ssub.s32 512, 512
      %55 = vsyncadd [#allocation10], %s54
      %s56 = sshll.u32 [#allocation9], 4
      %s57 = int_to_ptr.vmem [resolvable:$true] %s56
      %62 = dma.hbm_to_vmem [thread:$0]  %s3, 512, %s57, [#allocation10], 128, 128, 8
    $region17: #{tpu_custom_call.1} parent=1 // pred_fallthru
      _
    // Predicated region
    $region18: #{tpu_custom_call.1} parent=1 // pred_check
      _
    $region19: #{tpu_custom_call.1} parent=1 // pred_check_branch
      %64 = sbr.rel (0) target = $region21
    $region20: #{tpu_custom_call.1} parent=1 // pred_region
      _
    $region21: #{tpu_custom_call.1} parent=1 // pred_fallthru
      _
    // Predicated region
    $region22: #{tpu_custom_call.1} parent=1 // pred_check
      _
    $region23: #{tpu_custom_call.1} parent=1 // pred_check_branch
      %66 = sbr.rel (0) target = $region25
    $region24: #{tpu_custom_call.1} parent=1 // pred_region
      %67 = dma.done [#allocation4], 256
    $region25: #{tpu_custom_call.1} parent=1 // pred_fallthru
      _
    // Predicated region
    $region26: #{tpu_custom_call.1} parent=1 // pred_check
      _
    $region27: #{tpu_custom_call.1} parent=1 // pred_check_branch
      %69 = sbr.rel (0) target = $region29
    $region28: #{tpu_custom_call.1} parent=1 // pred_region
      %70 = dma.done [#allocation7], 32
    $region29: #{tpu_custom_call.1} parent=1 // pred_fallthru
      _
    // Predicated region
    $region30: #{tpu_custom_call.1} parent=1 // pred_check
      _
    $region31: #{tpu_custom_call.1} parent=1 // pred_check_branch
      %72 = sbr.rel (0) target = $region33
    $region32: #{tpu_custom_call.1} parent=1 // pred_region
      %73 = dma.done [#allocation7], 256
    $region33: #{tpu_custom_call.1} parent=1 // pred_fallthru
      _
    // Predicated region
    $region34: #{tpu_custom_call.1} parent=1 // pred_check
      _
    $region35: #{tpu_custom_call.1} parent=1 // pred_check_branch
      %75 = sbr.rel (0) target = $region37
    $region36: #{tpu_custom_call.1} parent=1 // pred_region
      %76 = dma.done [#allocation10], 512
    $region37: #{tpu_custom_call.1} parent=1 // pred_fallthru
      _
    %v77 = vld [vmem:[#allocation8] sm:$0xff]
    %v78 = vld [vmem:[#allocation8 + $0x8] sm:$0xff]
    %v79 = vld [vmem:[#allocation9] sm:$0xff]
    %v80 = vld [vmem:[#allocation9 + $0x8] sm:$0xff]
    %v81 = vld [vmem:[#allocation9 + $0x10] sm:$0xff]
    %v82 = vld [vmem:[#allocation9 + $0x18] sm:$0xff]
    %v83 = vld [vmem:[%s4] sm:$0x1]
    %v84 = vld [vmem:[#allocation3] sm:$0xff]
    %v85 = vld [vmem:[#allocation3 + $0x8] sm:$0xff]
    %v87 = vlaneseq
    %v88 = vshrl.u32 %v87, 7
    %v89 = vsub.s32 0, %v88
    %v90 = vrot.slane %v83, %v89
    %vm92 = vcmask 130048
    %v94 = vsel %vm92, %v84, 0
    %v97 = vsel %vm92, %v85, 0
    %99 = vmatprep.subr.mxu0 0.0
    %100 = vmatpush1.msra.mxu0 0.0
    %101 = vmatprep.subr.mxu0 0.0
    %102 = vmatpush1.msra.mxu0 0.0
    %103 = vmatprep.subr.mxu0 0.0
    %104 = vmatpush1.msra.mxu0 0.0
    %105 = vmatprep.subr.mxu0 0.0
    %106 = vmatpush1.msra.mxu0 0.0
    %107 = vmatprep.subr.mxu0 0.0
    %108 = vmatpush1.msra.mxu0 0.0
    %109 = vmatprep.subr.mxu0 0.0
    %110 = vmatpush1.msra.mxu0 0.0
    %111 = vmatprep.subr.mxu0 0.0
    %112 = vmatpush1.msra.mxu0 0.0
    %113 = vmatprep.subr.mxu0 0.0
    %114 = vmatpush1.msra.mxu0 0.0
    %115 = vmatprep.subr.mxu0 0.0
    %116 = vmatpush1.msra.mxu0 0.0
    %117 = vmatprep.subr.mxu0 0.0
    %118 = vmatpush1.msra.mxu0 0.0
    %119 = vmatprep.subr.mxu0 0.0
    %120 = vmatpush1.msra.mxu0 0.0
    %121 = vmatprep.subr.mxu0 0.0
    %122 = vmatpush1.msra.mxu0 0.0
    %123 = vmatprep.subr.mxu0 0.0
    %124 = vmatpush1.msra.mxu0 0.0
    %125 = vmatprep.subr.mxu0 0.0
    %126 = vmatpush1.msra.mxu0 0.0
    %127 = vmatprep.subr.mxu0 0.0
    %128 = vmatpush1.msra.mxu0 %v78
    %129 = vmatprep.subr.mxu0 0.0
    %130 = vmatpush1.msra.mxu0 %v77
    %131 = vmatprep.subr.mxu0 0.0
    %132 = vmatpush2.msra.mxu0 0.0
    %133 = vmatprep.subr.mxu0 0.0
    %134 = vmatpush2.msra.mxu0 0.0
    %135 = vmatprep.subr.mxu0 0.0
    %136 = vmatpush2.msra.mxu0 0.0
    %137 = vmatprep.subr.mxu0 0.0
    %138 = vmatpush2.msra.mxu0 0.0
    %139 = vmatprep.subr.mxu0 0.0
    %140 = vmatpush2.msra.mxu0 0.0
    %141 = vmatprep.subr.mxu0 0.0
    %142 = vmatpush2.msra.mxu0 0.0
    %143 = vmatprep.subr.mxu0 0.0
    %144 = vmatpush2.msra.mxu0 0.0
    %145 = vmatprep.subr.mxu0 0.0
    %146 = vmatpush2.msra.mxu0 0.0
    %147 = vmatprep.subr.mxu0 0.0
    %148 = vmatpush2.msra.mxu0 0.0
    %149 = vmatprep.subr.mxu0 0.0
    %150 = vmatpush2.msra.mxu0 0.0
    %151 = vmatprep.subr.mxu0 0.0
    %152 = vmatpush2.msra.mxu0 0.0
    %153 = vmatprep.subr.mxu0 0.0
    %154 = vmatpush2.msra.mxu0 0.0
    %155 = vmatprep.subr.mxu0 0.0
    %156 = vmatpush2.msra.mxu0 0.0
    %157 = vmatprep.subr.mxu0 0.0
    %158 = vmatpush2.msra.mxu0 0.0
    %159 = vmatprep.subr.mxu0 0.0
    %160 = vmatpush2.msra.mxu0 0.0
    %161 = vmatprep.subr.mxu0 0.0
    %162 = vmatpush2.msra.mxu0 0.0
    %163 = vmatprep.mubr.f32.mxu0 0.0
    %164 = vmatmul.mubr.f32.gmra.mxu0 %v94
    %v165 = vpop.f32.mrf.mxu0
    %v166 = vadd.f32 %v90, %v165
    %v167 = vpop.f32.mrf.mxu0
    %168 = vmatprep.mubr.f32.mxu0 0.0
    %169 = vmatmul.mubr.f32.gmra.mxu0 %v97
    %v170 = vpop.f32.mrf.mxu0
    %v171 = vadd.f32 %v90, %v170
    %v172 = vpop.f32.mrf.mxu0
    %173 = vdwg.mxu0
    %vm174 = vcmask 261120
    %175 = vst.msk [vmem:[#allocation2] sm:$0xff] %vm174, %v166
    %176 = vst.msk [vmem:[#allocation2 + $0x8] sm:$0xff] %vm174, %v171
    %v177 = vld [vmem:[#allocation6] sm:$0x3]
    %v178 = vld [vmem:[#allocation2] sm:$0x1]
    %v179 = vld [vmem:[#allocation2 + $0x8] sm:$0x1]
    %v181 = vsel %vm174, %v177, 0
    %183 = vmatprep.subr.mxu0 0.0
    %184 = vmatpush1.msra.mxu0 0.0
    %185 = vmatprep.subr.mxu0 0.0
    %186 = vmatpush1.msra.mxu0 0.0
    %187 = vmatprep.subr.mxu0 0.0
    %188 = vmatpush1.msra.mxu0 0.0
    %189 = vmatprep.subr.mxu0 0.0
    %190 = vmatpush1.msra.mxu0 0.0
    %191 = vmatprep.subr.mxu0 0.0
    %192 = vmatpush1.msra.mxu0 0.0
    %193 = vmatprep.subr.mxu0 0.0
    %194 = vmatpush1.msra.mxu0 0.0
    %195 = vmatprep.subr.mxu0 0.0
    %196 = vmatpush1.msra.mxu0 0.0
    %197 = vmatprep.subr.mxu0 0.0
    %198 = vmatpush1.msra.mxu0 0.0
    %199 = vmatprep.subr.mxu0 0.0
    %200 = vmatpush1.msra.mxu0 0.0
    %201 = vmatprep.subr.mxu0 0.0
    %202 = vmatpush1.msra.mxu0 0.0
    %203 = vmatprep.subr.mxu0 0.0
    %204 = vmatpush1.msra.mxu0 0.0
    %205 = vmatprep.subr.mxu0 0.0
    %206 = vmatpush1.msra.mxu0 0.0
    %207 = vmatprep.subr.mxu0 0.0
    %208 = vmatpush1.msra.mxu0 %v82
    %209 = vmatprep.subr.mxu0 0.0
    %210 = vmatpush1.msra.mxu0 %v81
    %211 = vmatprep.subr.mxu0 0.0
    %212 = vmatpush1.msra.mxu0 %v80
    %213 = vmatprep.subr.mxu0 0.0
    %214 = vmatpush1.msra.mxu0 %v79
    %215 = vmatprep.subr.mxu0 0.0
    %216 = vmatpush2.msra.mxu0 0.0
    %217 = vmatprep.subr.mxu0 0.0
    %218 = vmatpush2.msra.mxu0 0.0
    %219 = vmatprep.subr.mxu0 0.0
    %220 = vmatpush2.msra.mxu0 0.0
    %221 = vmatprep.subr.mxu0 0.0
    %222 = vmatpush2.msra.mxu0 0.0
    %223 = vmatprep.subr.mxu0 0.0
    %224 = vmatpush2.msra.mxu0 0.0
    %225 = vmatprep.subr.mxu0 0.0
    %226 = vmatpush2.msra.mxu0 0.0
    %227 = vmatprep.subr.mxu0 0.0
    %228 = vmatpush2.msra.mxu0 0.0
    %229 = vmatprep.subr.mxu0 0.0
    %230 = vmatpush2.msra.mxu0 0.0
    %231 = vmatprep.subr.mxu0 0.0
    %232 = vmatpush2.msra.mxu0 0.0
    %233 = vmatprep.subr.mxu0 0.0
    %234 = vmatpush2.msra.mxu0 0.0
    %235 = vmatprep.subr.mxu0 0.0
    %236 = vmatpush2.msra.mxu0 0.0
    %237 = vmatprep.subr.mxu0 0.0
    %238 = vmatpush2.msra.mxu0 0.0
    %239 = vmatprep.subr.mxu0 0.0
    %240 = vmatpush2.msra.mxu0 0.0
    %241 = vmatprep.subr.mxu0 0.0
    %242 = vmatpush2.msra.mxu0 0.0
    %243 = vmatprep.subr.mxu0 0.0
    %244 = vmatpush2.msra.mxu0 0.0
    %245 = vmatprep.subr.mxu0 0.0
    %246 = vmatpush2.msra.mxu0 0.0
    %247 = vmatprep.mubr.f32.mxu0 0.0
    %248 = vmatmul.mubr.f32.gmra.mxu0 %v181
    %v249 = vpop.f32.mrf.mxu0
    %v250 = vadd.f32 0.0, %v249
    %v251 = vpop.f32.mrf.mxu0
    %252 = vdwg.mxu0
    %v254 = vrot.slane %v250, 1
    %v257 = vadd.f32 %v178, %v250
    %v258 = vadd.f32 %v179, %v254
    %v259 = vtanh.pop %v257
    %v260 = vtanh.pop %v258
    %vm261 = vcmask 253952
    %262 = vst.msk [vmem:[#allocation2] sm:$0x1] %vm261, %v259
    %263 = vst.msk [vmem:[#allocation2 + $0x8] sm:$0x1] %vm261, %v260
    %v264 = vld [vmem:[#allocation2 + $0x1] sm:$0x1]
    %v265 = vld [vmem:[#allocation2 + $0x9] sm:$0x1]
    %v268 = vrot.slane %v260, 7
    %vm269 = vcmask 1041409
    %v270 = vsel %vm269, %v268, %v259
    %v271 = vsel %vm174, %v270, 0
    %273 = vmatprep.subr.mxu0 0.0
    %274 = vmatpush1.msra.mxu0 0.0
    %275 = vmatprep.subr.mxu0 0.0
    %276 = vmatpush1.msra.mxu0 0.0
    %277 = vmatprep.subr.mxu0 0.0
    %278 = vmatpush1.msra.mxu0 0.0
    %279 = vmatprep.subr.mxu0 0.0
    %280 = vmatpush1.msra.mxu0 0.0
    %281 = vmatprep.subr.mxu0 0.0
    %282 = vmatpush1.msra.mxu0 0.0
    %283 = vmatprep.subr.mxu0 0.0
    %284 = vmatpush1.msra.mxu0 0.0
    %285 = vmatprep.subr.mxu0 0.0
    %286 = vmatpush1.msra.mxu0 0.0
    %287 = vmatprep.subr.mxu0 0.0
    %288 = vmatpush1.msra.mxu0 0.0
    %289 = vmatprep.subr.mxu0 0.0
    %290 = vmatpush1.msra.mxu0 0.0
    %291 = vmatprep.subr.mxu0 0.0
    %292 = vmatpush1.msra.mxu0 0.0
    %293 = vmatprep.subr.mxu0 0.0
    %294 = vmatpush1.msra.mxu0 0.0
    %295 = vmatprep.subr.mxu0 0.0
    %296 = vmatpush1.msra.mxu0 0.0
    %297 = vmatprep.subr.mxu0 0.0
    %298 = vmatpush1.msra.mxu0 %v82
    %299 = vmatprep.subr.mxu0 0.0
    %300 = vmatpush1.msra.mxu0 %v81
    %301 = vmatprep.subr.mxu0 0.0
    %302 = vmatpush1.msra.mxu0 %v80
    %303 = vmatprep.subr.mxu0 0.0
    %304 = vmatpush1.msra.mxu0 %v79
    %305 = vmatprep.subr.mxu0 0.0
    %306 = vmatpush2.msra.mxu0 0.0
    %307 = vmatprep.subr.mxu0 0.0
    %308 = vmatpush2.msra.mxu0 0.0
    %309 = vmatprep.subr.mxu0 0.0
    %310 = vmatpush2.msra.mxu0 0.0
    %311 = vmatprep.subr.mxu0 0.0
    %312 = vmatpush2.msra.mxu0 0.0
    %313 = vmatprep.subr.mxu0 0.0
    %314 = vmatpush2.msra.mxu0 0.0
    %315 = vmatprep.subr.mxu0 0.0
    %316 = vmatpush2.msra.mxu0 0.0
    %317 = vmatprep.subr.mxu0 0.0
    %318 = vmatpush2.msra.mxu0 0.0
    %319 = vmatprep.subr.mxu0 0.0
    %320 = vmatpush2.msra.mxu0 0.0
    %321 = vmatprep.subr.mxu0 0.0
    %322 = vmatpush2.msra.mxu0 0.0
    %323 = vmatprep.subr.mxu0 0.0
    %324 = vmatpush2.msra.mxu0 0.0
    %325 = vmatprep.subr.mxu0 0.0
    %326 = vmatpush2.msra.mxu0 0.0
    %327 = vmatprep.subr.mxu0 0.0
    %328 = vmatpush2.msra.mxu0 0.0
    %329 = vmatprep.subr.mxu0 0.0
    %330 = vmatpush2.msra.mxu0 0.0
    %331 = vmatprep.subr.mxu0 0.0
    %332 = vmatpush2.msra.mxu0 0.0
    %333 = vmatprep.subr.mxu0 0.0
    %334 = vmatpush2.msra.mxu0 0.0
    %335 = vmatprep.subr.mxu0 0.0
    %336 = vmatpush2.msra.mxu0 0.0
    %337 = vmatprep.mubr.f32.mxu0 0.0
    %338 = vmatmul.mubr.f32.gmra.mxu0 %v271
    %v339 = vpop.f32.mrf.mxu0
    %v340 = vadd.f32 0.0, %v339
    %v341 = vpop.f32.mrf.mxu0
    %342 = vdwg.mxu0
    %v344 = vrot.slane %v340, 1
    %v347 = vadd.f32 %v264, %v340
    %v348 = vadd.f32 %v265, %v344
    %v349 = vtanh.pop %v347
    %v350 = vtanh.pop %v348
    %351 = vst.msk [vmem:[#allocation2 + $0x1] sm:$0x1] %vm261, %v349
    %352 = vst.msk [vmem:[#allocation2 + $0x9] sm:$0x1] %vm261, %v350
    %v353 = vld [vmem:[#allocation2 + $0x2] sm:$0x1]
    %v354 = vld [vmem:[#allocation2 + $0xa] sm:$0x1]
    %v357 = vrot.slane %v350, 7
    %v358 = vsel %vm269, %v357, %v349
    %v359 = vsel %vm174, %v358, 0
    %361 = vmatprep.subr.mxu0 0.0
    %362 = vmatpush1.msra.mxu0 0.0
    %363 = vmatprep.subr.mxu0 0.0
    %364 = vmatpush1.msra.mxu0 0.0
    %365 = vmatprep.subr.mxu0 0.0
    %366 = vmatpush1.msra.mxu0 0.0
    %367 = vmatprep.subr.mxu0 0.0
    %368 = vmatpush1.msra.mxu0 0.0
    %369 = vmatprep.subr.mxu0 0.0
    %370 = vmatpush1.msra.mxu0 0.0
    %371 = vmatprep.subr.mxu0 0.0
    %372 = vmatpush1.msra.mxu0 0.0
    %373 = vmatprep.subr.mxu0 0.0
    %374 = vmatpush1.msra.mxu0 0.0
    %375 = vmatprep.subr.mxu0 0.0
    %376 = vmatpush1.msra.mxu0 0.0
    %377 = vmatprep.subr.mxu0 0.0
    %378 = vmatpush1.msra.mxu0 0.0
    %379 = vmatprep.subr.mxu0 0.0
    %380 = vmatpush1.msra.mxu0 0.0
    %381 = vmatprep.subr.mxu0 0.0
    %382 = vmatpush1.msra.mxu0 0.0
    %383 = vmatprep.subr.mxu0 0.0
    %384 = vmatpush1.msra.mxu0 0.0
    %385 = vmatprep.subr.mxu0 0.0
    %386 = vmatpush1.msra.mxu0 %v82
    %387 = vmatprep.subr.mxu0 0.0
    %388 = vmatpush1.msra.mxu0 %v81
    %389 = vmatprep.subr.mxu0 0.0
    %390 = vmatpush1.msra.mxu0 %v80
    %391 = vmatprep.subr.mxu0 0.0
    %392 = vmatpush1.msra.mxu0 %v79
    %393 = vmatprep.subr.mxu0 0.0
    %394 = vmatpush2.msra.mxu0 0.0
    %395 = vmatprep.subr.mxu0 0.0
    %396 = vmatpush2.msra.mxu0 0.0
    %397 = vmatprep.subr.mxu0 0.0
    %398 = vmatpush2.msra.mxu0 0.0
    %399 = vmatprep.subr.mxu0 0.0
    %400 = vmatpush2.msra.mxu0 0.0
    %401 = vmatprep.subr.mxu0 0.0
    %402 = vmatpush2.msra.mxu0 0.0
    %403 = vmatprep.subr.mxu0 0.0
    %404 = vmatpush2.msra.mxu0 0.0
    %405 = vmatprep.subr.mxu0 0.0
    %406 = vmatpush2.msra.mxu0 0.0
    %407 = vmatprep.subr.mxu0 0.0
    %408 = vmatpush2.msra.mxu0 0.0
    %409 = vmatprep.subr.mxu0 0.0
    %410 = vmatpush2.msra.mxu0 0.0
    %411 = vmatprep.subr.mxu0 0.0
    %412 = vmatpush2.msra.mxu0 0.0
    %413 = vmatprep.subr.mxu0 0.0
    %414 = vmatpush2.msra.mxu0 0.0
    %415 = vmatprep.subr.mxu0 0.0
    %416 = vmatpush2.msra.mxu0 0.0
    %417 = vmatprep.subr.mxu0 0.0
    %418 = vmatpush2.msra.mxu0 0.0
    %419 = vmatprep.subr.mxu0 0.0
    %420 = vmatpush2.msra.mxu0 0.0
    %421 = vmatprep.subr.mxu0 0.0
    %422 = vmatpush2.msra.mxu0 0.0
    %423 = vmatprep.subr.mxu0 0.0
    %424 = vmatpush2.msra.mxu0 0.0
    %425 = vmatprep.mubr.f32.mxu0 0.0
    %426 = vmatmul.mubr.f32.gmra.mxu0 %v359
    %v427 = vpop.f32.mrf.mxu0
    %v428 = vadd.f32 0.0, %v427
    %v429 = vpop.f32.mrf.mxu0
    %430 = vdwg.mxu0
    %v432 = vrot.slane %v428, 1
    %v435 = vadd.f32 %v353, %v428
    %v436 = vadd.f32 %v354, %v432
    %v437 = vtanh.pop %v435
    %v438 = vtanh.pop %v436
    %439 = vst.msk [vmem:[#allocation2 + $0x2] sm:$0x1] %vm261, %v437
    %440 = vst.msk [vmem:[#allocation2 + $0xa] sm:$0x1] %vm261, %v438
    %v441 = vld [vmem:[#allocation2 + $0x3] sm:$0x1]
    %v442 = vld [vmem:[#allocation2 + $0xb] sm:$0x1]
    %v445 = vrot.slane %v438, 7
    %v446 = vsel %vm269, %v445, %v437
    %v447 = vsel %vm174, %v446, 0
    %449 = vmatprep.subr.mxu0 0.0
    %450 = vmatpush1.msra.mxu0 0.0
    %451 = vmatprep.subr.mxu0 0.0
    %452 = vmatpush1.msra.mxu0 0.0
    %453 = vmatprep.subr.mxu0 0.0
    %454 = vmatpush1.msra.mxu0 0.0
    %455 = vmatprep.subr.mxu0 0.0
    %456 = vmatpush1.msra.mxu0 0.0
    %457 = vmatprep.subr.mxu0 0.0
    %458 = vmatpush1.msra.mxu0 0.0
    %459 = vmatprep.subr.mxu0 0.0
    %460 = vmatpush1.msra.mxu0 0.0
    %461 = vmatprep.subr.mxu0 0.0
    %462 = vmatpush1.msra.mxu0 0.0
    %463 = vmatprep.subr.mxu0 0.0
    %464 = vmatpush1.msra.mxu0 0.0
    %465 = vmatprep.subr.mxu0 0.0
    %466 = vmatpush1.msra.mxu0 0.0
    %467 = vmatprep.subr.mxu0 0.0
    %468 = vmatpush1.msra.mxu0 0.0
    %469 = vmatprep.subr.mxu0 0.0
    %470 = vmatpush1.msra.mxu0 0.0
    %471 = vmatprep.subr.mxu0 0.0
    %472 = vmatpush1.msra.mxu0 0.0
    %473 = vmatprep.subr.mxu0 0.0
    %474 = vmatpush1.msra.mxu0 %v82
    %475 = vmatprep.subr.mxu0 0.0
    %476 = vmatpush1.msra.mxu0 %v81
    %477 = vmatprep.subr.mxu0 0.0
    %478 = vmatpush1.msra.mxu0 %v80
    %479 = vmatprep.subr.mxu0 0.0
    %480 = vmatpush1.msra.mxu0 %v79
    %481 = vmatprep.subr.mxu0 0.0
    %482 = vmatpush2.msra.mxu0 0.0
    %483 = vmatprep.subr.mxu0 0.0
    %484 = vmatpush2.msra.mxu0 0.0
    %485 = vmatprep.subr.mxu0 0.0
    %486 = vmatpush2.msra.mxu0 0.0
    %487 = vmatprep.subr.mxu0 0.0
    %488 = vmatpush2.msra.mxu0 0.0
    %489 = vmatprep.subr.mxu0 0.0
    %490 = vmatpush2.msra.mxu0 0.0
    %491 = vmatprep.subr.mxu0 0.0
    %492 = vmatpush2.msra.mxu0 0.0
    %493 = vmatprep.subr.mxu0 0.0
    %494 = vmatpush2.msra.mxu0 0.0
    %495 = vmatprep.subr.mxu0 0.0
    %496 = vmatpush2.msra.mxu0 0.0
    %497 = vmatprep.subr.mxu0 0.0
    %498 = vmatpush2.msra.mxu0 0.0
    %499 = vmatprep.subr.mxu0 0.0
    %500 = vmatpush2.msra.mxu0 0.0
    %501 = vmatprep.subr.mxu0 0.0
    %502 = vmatpush2.msra.mxu0 0.0
    %503 = vmatprep.subr.mxu0 0.0
    %504 = vmatpush2.msra.mxu0 0.0
    %505 = vmatprep.subr.mxu0 0.0
    %506 = vmatpush2.msra.mxu0 0.0
    %507 = vmatprep.subr.mxu0 0.0
    %508 = vmatpush2.msra.mxu0 0.0
    %509 = vmatprep.subr.mxu0 0.0
    %510 = vmatpush2.msra.mxu0 0.0
    %511 = vmatprep.subr.mxu0 0.0
    %512 = vmatpush2.msra.mxu0 0.0
    %513 = vmatprep.mubr.f32.mxu0 0.0
    %514 = vmatmul.mubr.f32.gmra.mxu0 %v447
    %v515 = vpop.f32.mrf.mxu0
    %v516 = vadd.f32 0.0, %v515
    %v517 = vpop.f32.mrf.mxu0
    %518 = vdwg.mxu0
    %v520 = vrot.slane %v516, 1
    %v523 = vadd.f32 %v441, %v516
    %v524 = vadd.f32 %v442, %v520
    %v525 = vtanh.pop %v523
    %v526 = vtanh.pop %v524
    %527 = vst.msk [vmem:[#allocation2 + $0x3] sm:$0x1] %vm261, %v525
    %528 = vst.msk [vmem:[#allocation2 + $0xb] sm:$0x1] %vm261, %v526
    %v529 = vld [vmem:[#allocation2 + $0x4] sm:$0x1]
    %v530 = vld [vmem:[#allocation2 + $0xc] sm:$0x1]
    %v533 = vrot.slane %v526, 7
    %v534 = vsel %vm269, %v533, %v525
    %v535 = vsel %vm174, %v534, 0
    %537 = vmatprep.subr.mxu0 0.0
    %538 = vmatpush1.msra.mxu0 0.0
    %539 = vmatprep.subr.mxu0 0.0
    %540 = vmatpush1.msra.mxu0 0.0
    %541 = vmatprep.subr.mxu0 0.0
    %542 = vmatpush1.msra.mxu0 0.0
    %543 = vmatprep.subr.mxu0 0.0
    %544 = vmatpush1.msra.mxu0 0.0
    %545 = vmatprep.subr.mxu0 0.0
    %546 = vmatpush1.msra.mxu0 0.0
    %547 = vmatprep.subr.mxu0 0.0
    %548 = vmatpush1.msra.mxu0 0.0
    %549 = vmatprep.subr.mxu0 0.0
    %550 = vmatpush1.msra.mxu0 0.0
    %551 = vmatprep.subr.mxu0 0.0
    %552 = vmatpush1.msra.mxu0 0.0
    %553 = vmatprep.subr.mxu0 0.0
    %554 = vmatpush1.msra.mxu0 0.0
    %555 = vmatprep.subr.mxu0 0.0
    %556 = vmatpush1.msra.mxu0 0.0
    %557 = vmatprep.subr.mxu0 0.0
    %558 = vmatpush1.msra.mxu0 0.0
    %559 = vmatprep.subr.mxu0 0.0
    %560 = vmatpush1.msra.mxu0 0.0
    %561 = vmatprep.subr.mxu0 0.0
    %562 = vmatpush1.msra.mxu0 %v82
    %563 = vmatprep.subr.mxu0 0.0
    %564 = vmatpush1.msra.mxu0 %v81
    %565 = vmatprep.subr.mxu0 0.0
    %566 = vmatpush1.msra.mxu0 %v80
    %567 = vmatprep.subr.mxu0 0.0
    %568 = vmatpush1.msra.mxu0 %v79
    %569 = vmatprep.subr.mxu0 0.0
    %570 = vmatpush2.msra.mxu0 0.0
    %571 = vmatprep.subr.mxu0 0.0
    %572 = vmatpush2.msra.mxu0 0.0
    %573 = vmatprep.subr.mxu0 0.0
    %574 = vmatpush2.msra.mxu0 0.0
    %575 = vmatprep.subr.mxu0 0.0
    %576 = vmatpush2.msra.mxu0 0.0
    %577 = vmatprep.subr.mxu0 0.0
    %578 = vmatpush2.msra.mxu0 0.0
    %579 = vmatprep.subr.mxu0 0.0
    %580 = vmatpush2.msra.mxu0 0.0
    %581 = vmatprep.subr.mxu0 0.0
    %582 = vmatpush2.msra.mxu0 0.0
    %583 = vmatprep.subr.mxu0 0.0
    %584 = vmatpush2.msra.mxu0 0.0
    %585 = vmatprep.subr.mxu0 0.0
    %586 = vmatpush2.msra.mxu0 0.0
    %587 = vmatprep.subr.mxu0 0.0
    %588 = vmatpush2.msra.mxu0 0.0
    %589 = vmatprep.subr.mxu0 0.0
    %590 = vmatpush2.msra.mxu0 0.0
    %591 = vmatprep.subr.mxu0 0.0
    %592 = vmatpush2.msra.mxu0 0.0
    %593 = vmatprep.subr.mxu0 0.0
    %594 = vmatpush2.msra.mxu0 0.0
    %595 = vmatprep.subr.mxu0 0.0
    %596 = vmatpush2.msra.mxu0 0.0
    %597 = vmatprep.subr.mxu0 0.0
    %598 = vmatpush2.msra.mxu0 0.0
    %599 = vmatprep.subr.mxu0 0.0
    %600 = vmatpush2.msra.mxu0 0.0
    %601 = vmatprep.mubr.f32.mxu0 0.0
    %602 = vmatmul.mubr.f32.gmra.mxu0 %v535
    %v603 = vpop.f32.mrf.mxu0
    %v604 = vadd.f32 0.0, %v603
    %v605 = vpop.f32.mrf.mxu0
    %606 = vdwg.mxu0
    %v608 = vrot.slane %v604, 1
    %v611 = vadd.f32 %v529, %v604
    %v612 = vadd.f32 %v530, %v608
    %v613 = vtanh.pop %v611
    %v614 = vtanh.pop %v612
    %615 = vst.msk [vmem:[#allocation2 + $0x4] sm:$0x1] %vm261, %v613
    %616 = vst.msk [vmem:[#allocation2 + $0xc] sm:$0x1] %vm261, %v614
    %v617 = vld [vmem:[#allocation2 + $0x5] sm:$0x1]
    %v618 = vld [vmem:[#allocation2 + $0xd] sm:$0x1]
    %v621 = vrot.slane %v614, 7
    %v622 = vsel %vm269, %v621, %v613
    %v623 = vsel %vm174, %v622, 0
    %625 = vmatprep.subr.mxu0 0.0
    %626 = vmatpush1.msra.mxu0 0.0
    %627 = vmatprep.subr.mxu0 0.0
    %628 = vmatpush1.msra.mxu0 0.0
    %629 = vmatprep.subr.mxu0 0.0
    %630 = vmatpush1.msra.mxu0 0.0
    %631 = vmatprep.subr.mxu0 0.0
    %632 = vmatpush1.msra.mxu0 0.0
    %633 = vmatprep.subr.mxu0 0.0
    %634 = vmatpush1.msra.mxu0 0.0
    %635 = vmatprep.subr.mxu0 0.0
    %636 = vmatpush1.msra.mxu0 0.0
    %637 = vmatprep.subr.mxu0 0.0
    %638 = vmatpush1.msra.mxu0 0.0
    %639 = vmatprep.subr.mxu0 0.0
    %640 = vmatpush1.msra.mxu0 0.0
    %641 = vmatprep.subr.mxu0 0.0
    %642 = vmatpush1.msra.mxu0 0.0
    %643 = vmatprep.subr.mxu0 0.0
    %644 = vmatpush1.msra.mxu0 0.0
    %645 = vmatprep.subr.mxu0 0.0
    %646 = vmatpush1.msra.mxu0 0.0
    %647 = vmatprep.subr.mxu0 0.0
    %648 = vmatpush1.msra.mxu0 0.0
    %649 = vmatprep.subr.mxu0 0.0
    %650 = vmatpush1.msra.mxu0 %v82
    %651 = vmatprep.subr.mxu0 0.0
    %652 = vmatpush1.msra.mxu0 %v81
    %653 = vmatprep.subr.mxu0 0.0
    %654 = vmatpush1.msra.mxu0 %v80
    %655 = vmatprep.subr.mxu0 0.0
    %656 = vmatpush1.msra.mxu0 %v79
    %657 = vmatprep.subr.mxu0 0.0
    %658 = vmatpush2.msra.mxu0 0.0
    %659 = vmatprep.subr.mxu0 0.0
    %660 = vmatpush2.msra.mxu0 0.0
    %661 = vmatprep.subr.mxu0 0.0
    %662 = vmatpush2.msra.mxu0 0.0
    %663 = vmatprep.subr.mxu0 0.0
    %664 = vmatpush2.msra.mxu0 0.0
    %665 = vmatprep.subr.mxu0 0.0
    %666 = vmatpush2.msra.mxu0 0.0
    %667 = vmatprep.subr.mxu0 0.0
    %668 = vmatpush2.msra.mxu0 0.0
    %669 = vmatprep.subr.mxu0 0.0
    %670 = vmatpush2.msra.mxu0 0.0
    %671 = vmatprep.subr.mxu0 0.0
    %672 = vmatpush2.msra.mxu0 0.0
    %673 = vmatprep.subr.mxu0 0.0
    %674 = vmatpush2.msra.mxu0 0.0
    %675 = vmatprep.subr.mxu0 0.0
    %676 = vmatpush2.msra.mxu0 0.0
    %677 = vmatprep.subr.mxu0 0.0
    %678 = vmatpush2.msra.mxu0 0.0
    %679 = vmatprep.subr.mxu0 0.0
    %680 = vmatpush2.msra.mxu0 0.0
    %681 = vmatprep.subr.mxu0 0.0
    %682 = vmatpush2.msra.mxu0 0.0
    %683 = vmatprep.subr.mxu0 0.0
    %684 = vmatpush2.msra.mxu0 0.0
    %685 = vmatprep.subr.mxu0 0.0
    %686 = vmatpush2.msra.mxu0 0.0
    %687 = vmatprep.subr.mxu0 0.0
    %688 = vmatpush2.msra.mxu0 0.0
    %689 = vmatprep.mubr.f32.mxu0 0.0
    %690 = vmatmul.mubr.f32.gmra.mxu0 %v623
    %v691 = vpop.f32.mrf.mxu0
    %v692 = vadd.f32 0.0, %v691
    %v693 = vpop.f32.mrf.mxu0
    %694 = vdwg.mxu0
    %v696 = vrot.slane %v692, 1
    %v699 = vadd.f32 %v617, %v692
    %v700 = vadd.f32 %v618, %v696
    %v701 = vtanh.pop %v699
    %v702 = vtanh.pop %v700
    %703 = vst.msk [vmem:[#allocation2 + $0x5] sm:$0x1] %vm261, %v701
    %704 = vst.msk [vmem:[#allocation2 + $0xd] sm:$0x1] %vm261, %v702
    %v705 = vld [vmem:[#allocation2 + $0x6] sm:$0x1]
    %v706 = vld [vmem:[#allocation2 + $0xe] sm:$0x1]
    %v709 = vrot.slane %v702, 7
    %v710 = vsel %vm269, %v709, %v701
    %v711 = vsel %vm174, %v710, 0
    %713 = vmatprep.subr.mxu0 0.0
    %714 = vmatpush1.msra.mxu0 0.0
    %715 = vmatprep.subr.mxu0 0.0
    %716 = vmatpush1.msra.mxu0 0.0
    %717 = vmatprep.subr.mxu0 0.0
    %718 = vmatpush1.msra.mxu0 0.0
    %719 = vmatprep.subr.mxu0 0.0
    %720 = vmatpush1.msra.mxu0 0.0
    %721 = vmatprep.subr.mxu0 0.0
    %722 = vmatpush1.msra.mxu0 0.0
    %723 = vmatprep.subr.mxu0 0.0
    %724 = vmatpush1.msra.mxu0 0.0
    %725 = vmatprep.subr.mxu0 0.0
    %726 = vmatpush1.msra.mxu0 0.0
    %727 = vmatprep.subr.mxu0 0.0
    %728 = vmatpush1.msra.mxu0 0.0
    %729 = vmatprep.subr.mxu0 0.0
    %730 = vmatpush1.msra.mxu0 0.0
    %731 = vmatprep.subr.mxu0 0.0
    %732 = vmatpush1.msra.mxu0 0.0
    %733 = vmatprep.subr.mxu0 0.0
    %734 = vmatpush1.msra.mxu0 0.0
    %735 = vmatprep.subr.mxu0 0.0
    %736 = vmatpush1.msra.mxu0 0.0
    %737 = vmatprep.subr.mxu0 0.0
    %738 = vmatpush1.msra.mxu0 %v82
    %739 = vmatprep.subr.mxu0 0.0
    %740 = vmatpush1.msra.mxu0 %v81
    %741 = vmatprep.subr.mxu0 0.0
    %742 = vmatpush1.msra.mxu0 %v80
    %743 = vmatprep.subr.mxu0 0.0
    %744 = vmatpush1.msra.mxu0 %v79
    %745 = vmatprep.subr.mxu0 0.0
    %746 = vmatpush2.msra.mxu0 0.0
    %747 = vmatprep.subr.mxu0 0.0
    %748 = vmatpush2.msra.mxu0 0.0
    %749 = vmatprep.subr.mxu0 0.0
    %750 = vmatpush2.msra.mxu0 0.0
    %751 = vmatprep.subr.mxu0 0.0
    %752 = vmatpush2.msra.mxu0 0.0
    %753 = vmatprep.subr.mxu0 0.0
    %754 = vmatpush2.msra.mxu0 0.0
    %755 = vmatprep.subr.mxu0 0.0
    %756 = vmatpush2.msra.mxu0 0.0
    %757 = vmatprep.subr.mxu0 0.0
    %758 = vmatpush2.msra.mxu0 0.0
    %759 = vmatprep.subr.mxu0 0.0
    %760 = vmatpush2.msra.mxu0 0.0
    %761 = vmatprep.subr.mxu0 0.0
    %762 = vmatpush2.msra.mxu0 0.0
    %763 = vmatprep.subr.mxu0 0.0
    %764 = vmatpush2.msra.mxu0 0.0
    %765 = vmatprep.subr.mxu0 0.0
    %766 = vmatpush2.msra.mxu0 0.0
    %767 = vmatprep.subr.mxu0 0.0
    %768 = vmatpush2.msra.mxu0 0.0
    %769 = vmatprep.subr.mxu0 0.0
    %770 = vmatpush2.msra.mxu0 0.0
    %771 = vmatprep.subr.mxu0 0.0
    %772 = vmatpush2.msra.mxu0 0.0
    %773 = vmatprep.subr.mxu0 0.0
    %774 = vmatpush2.msra.mxu0 0.0
    %775 = vmatprep.subr.mxu0 0.0
    %776 = vmatpush2.msra.mxu0 0.0
    %777 = vmatprep.mubr.f32.mxu0 0.0
    %778 = vmatmul.mubr.f32.gmra.mxu0 %v711
    %v779 = vpop.f32.mrf.mxu0
    %v780 = vadd.f32 0.0, %v779
    %v781 = vpop.f32.mrf.mxu0
    %782 = vdwg.mxu0
    %v784 = vrot.slane %v780, 1
    %v787 = vadd.f32 %v705, %v780
    %v788 = vadd.f32 %v706, %v784
    %v789 = vtanh.pop %v787
    %v790 = vtanh.pop %v788
    %791 = vst.msk [vmem:[#allocation2 + $0x6] sm:$0x1] %vm261, %v789
    %792 = vst.msk [vmem:[#allocation2 + $0xe] sm:$0x1] %vm261, %v790
    %v793 = vld [vmem:[#allocation2 + $0x7] sm:$0x1]
    %v794 = vld [vmem:[#allocation2 + $0xf] sm:$0x1]
    %v797 = vrot.slane %v790, 7
    %v798 = vsel %vm269, %v797, %v789
    %v799 = vsel %vm174, %v798, 0
    %801 = vmatprep.subr.mxu0 0.0
    %802 = vmatpush1.msra.mxu0 0.0
    %803 = vmatprep.subr.mxu0 0.0
    %804 = vmatpush1.msra.mxu0 0.0
    %805 = vmatprep.subr.mxu0 0.0
    %806 = vmatpush1.msra.mxu0 0.0
    %807 = vmatprep.subr.mxu0 0.0
    %808 = vmatpush1.msra.mxu0 0.0
    %809 = vmatprep.subr.mxu0 0.0
    %810 = vmatpush1.msra.mxu0 0.0
    %811 = vmatprep.subr.mxu0 0.0
    %812 = vmatpush1.msra.mxu0 0.0
    %813 = vmatprep.subr.mxu0 0.0
    %814 = vmatpush1.msra.mxu0 0.0
    %815 = vmatprep.subr.mxu0 0.0
    %816 = vmatpush1.msra.mxu0 0.0
    %817 = vmatprep.subr.mxu0 0.0
    %818 = vmatpush1.msra.mxu0 0.0
    %819 = vmatprep.subr.mxu0 0.0
    %820 = vmatpush1.msra.mxu0 0.0
    %821 = vmatprep.subr.mxu0 0.0
    %822 = vmatpush1.msra.mxu0 0.0
    %823 = vmatprep.subr.mxu0 0.0
    %824 = vmatpush1.msra.mxu0 0.0
    %825 = vmatprep.subr.mxu0 0.0
    %826 = vmatpush1.msra.mxu0 %v82
    %827 = vmatprep.subr.mxu0 0.0
    %828 = vmatpush1.msra.mxu0 %v81
    %829 = vmatprep.subr.mxu0 0.0
    %830 = vmatpush1.msra.mxu0 %v80
    %831 = vmatprep.subr.mxu0 0.0
    %832 = vmatpush1.msra.mxu0 %v79
    %833 = vmatprep.subr.mxu0 0.0
    %834 = vmatpush2.msra.mxu0 0.0
    %835 = vmatprep.subr.mxu0 0.0
    %836 = vmatpush2.msra.mxu0 0.0
    %837 = vmatprep.subr.mxu0 0.0
    %838 = vmatpush2.msra.mxu0 0.0
    %839 = vmatprep.subr.mxu0 0.0
    %840 = vmatpush2.msra.mxu0 0.0
    %841 = vmatprep.subr.mxu0 0.0
    %842 = vmatpush2.msra.mxu0 0.0
    %843 = vmatprep.subr.mxu0 0.0
    %844 = vmatpush2.msra.mxu0 0.0
    %845 = vmatprep.subr.mxu0 0.0
    %846 = vmatpush2.msra.mxu0 0.0
    %847 = vmatprep.subr.mxu0 0.0
    %848 = vmatpush2.msra.mxu0 0.0
    %849 = vmatprep.subr.mxu0 0.0
    %850 = vmatpush2.msra.mxu0 0.0
    %851 = vmatprep.subr.mxu0 0.0
    %852 = vmatpush2.msra.mxu0 0.0
    %853 = vmatprep.subr.mxu0 0.0
    %854 = vmatpush2.msra.mxu0 0.0
    %855 = vmatprep.subr.mxu0 0.0
    %856 = vmatpush2.msra.mxu0 0.0
    %857 = vmatprep.subr.mxu0 0.0
    %858 = vmatpush2.msra.mxu0 0.0
    %859 = vmatprep.subr.mxu0 0.0
    %860 = vmatpush2.msra.mxu0 0.0
    %861 = vmatprep.subr.mxu0 0.0
    %862 = vmatpush2.msra.mxu0 0.0
    %863 = vmatprep.subr.mxu0 0.0
    %864 = vmatpush2.msra.mxu0 0.0
    %865 = vmatprep.mubr.f32.mxu0 0.0
    %866 = vmatmul.mubr.f32.gmra.mxu0 %v799
    %v867 = vpop.f32.mrf.mxu0
    %v868 = vadd.f32 0.0, %v867
    %v869 = vpop.f32.mrf.mxu0
    %870 = vdwg.mxu0
    %v872 = vrot.slane %v868, 1
    %v875 = vadd.f32 %v793, %v868
    %v876 = vadd.f32 %v794, %v872
    %v877 = vtanh.pop %v875
    %v878 = vtanh.pop %v876
    %879 = vst.msk [vmem:[#allocation2 + $0x7] sm:$0x1] %vm261, %v877
    %880 = vst.msk [vmem:[#allocation2 + $0xf] sm:$0x1] %vm261, %v878
    %v881 = vld [vmem:[#allocation2] sm:$0xff]
    %v882 = vld [vmem:[#allocation2 + $0x8] sm:$0xff]
    %883 = vst.msk [vmem:[#allocation11] sm:$0xff] %vm174, %v881
    %884 = vst.msk [vmem:[#allocation11 + $0x8] sm:$0xff] %vm174, %v882
    %v887 = vrot.slane %v878, 7
    %v888 = vsel %vm269, %v887, %v877
    %vm890 = vcmask 254976
    %891 = vst.msk [vmem:[#allocation12] sm:$0x3] %vm890, %v888
    // Predicated region
    $region38: #{tpu_custom_call.1} parent=1 // pred_check
      _
    $region39: #{tpu_custom_call.1} parent=1 // pred_check_branch
      %893 = sbr.rel (0) target = $region41
    $region40: #{tpu_custom_call.1} parent=1 // pred_region
      %s895 = ssub.s32 256, 256
      %896 = vsyncadd [#allocation5], %s895
      %s897 = sshll.u32 [#allocation11], 4
      %s898 = int_to_ptr.vmem [resolvable:$true] %s897
      %903 = dma.vmem_to_hbm [thread:$0]  %s898, 256, %s5, [#allocation5], 128, 128, 8
    $region41: #{tpu_custom_call.1} parent=1 // pred_fallthru
      _
    // Predicated region
    $region42: #{tpu_custom_call.1} parent=1 // pred_check
      _
    $region43: #{tpu_custom_call.1} parent=1 // pred_check_branch
      %905 = sbr.rel (0) target = $region45
    $region44: #{tpu_custom_call.1} parent=1 // pred_region
      %s907 = ssub.s32 32, 32
      %908 = vsyncadd [#allocation13], %s907
      %s910 = sshll.u32 [#allocation12], 4
      %s911 = int_to_ptr.vmem [resolvable:$true] %s910
      %913 = dma.vmem_to_hbm [thread:$0]  %s911, 32, %s6, [#allocation13]
    $region45: #{tpu_custom_call.1} parent=1 // pred_fallthru
      _
    // Predicated region
    $region46: #{tpu_custom_call.1} parent=1 // pred_check
      _
    $region47: #{tpu_custom_call.1} parent=1 // pred_check_branch
      %915 = sbr.rel (0) target = $region49
    $region48: #{tpu_custom_call.1} parent=1 // pred_region
      %916 = dma.done [#allocation5], 256
    $region49: #{tpu_custom_call.1} parent=1 // pred_fallthru
      _
    // Predicated region
    $region50: #{tpu_custom_call.1} parent=1 // pred_check
      _
    $region51: #{tpu_custom_call.1} parent=1 // pred_check_branch
      %918 = sbr.rel (0) target = $region53
    $region52: #{tpu_custom_call.1} parent=1 // pred_region
      %919 = dma.done [#allocation13], 32
    $region53: #{tpu_custom_call.1} parent=1 // pred_fallthru
      _
    %920 = vsyncpa [#allocation4], 1
    %921 = vsyncpa [#allocation7], 1
    %922 = vsyncpa [#allocation10], 1
    %923 = vsyncpa [#allocation5], 1
    %924 = vsyncpa [#allocation13], 1

</llo_original>
